<compile_context>
chip_gen: v7x
topology: tpu7x:2x2x1
jax: 0.10.0
libtpu: 0.0.40
codegen_flags: <defaults>
</compile_context>

<pallas_src>
import jax
import jax.numpy as jnp
from jax.experimental import pallas as pl
from jax.experimental.pallas import tpu as pltpu

# ---- static configuration (consistent with the module's configs) ------------
B = 2              # batch_size
SEQ_LEN = 8        # seq_len
ENC_IN = 4         # enc_in
KERNEL_SIZE = 2    # input_size = (enc_in*seq_len - 1)*num_kernels  =>  k=2
NUM_FILTERS = 3    # num_kernels
LABEL_LEN = 4      # label_len
L = SEQ_LEN * ENC_IN                 # 32  (flattened input length)
LM1 = L - KERNEL_SIZE + 1            # 31  (conv output length per filter)
H1, H2, H3, H4 = 20, 15, 10, 5       # dense layer widths

LANES = 128
TILE_ROWS = 8                        # sublane granule; rows processed per grid step


def _rup8(n):
    return (n + 7) & ~7


# Per-layer contraction extents: real input width + 1 bias-carrier lane, rounded
# up to a multiple of 8 sublanes so every weight block is a whole-vreg load.
K1 = _rup8(L + 1)    # 40
K2 = _rup8(H1 + 1)   # 24
K3 = _rup8(H2 + 1)   # 16
K4 = _rup8(H3 + 1)   # 16
K5 = _rup8(H4 + 1)   # 8

ROW_W1 = 0
ROW_W2 = ROW_W1 + K1        # 40
ROW_W3 = ROW_W2 + K2        # 64
ROW_W4 = ROW_W3 + K3        # 80
ROW_W5 = ROW_W4 + K4        # 96
SLAB_ROWS = ROW_W5 + K5     # 104

ONE_LANE = L                # lane of the padded input that carries the constant 1.0


def ffn_kernel(x_ref, slab_ref, out_ref):
    # x_ref: (TILE_ROWS, 128); lanes [0, L) are data, lane ONE_LANE == 1.0,
    # the rest are zero.  All weight slices below are 8-aligned, 128-lane,
    # whole-vreg loads; biases are folded in via the carrier lane.
    x = x_ref[...]

    h = jnp.maximum(jnp.dot(x[:, :K1], slab_ref[ROW_W1:ROW_W1 + K1, :],
                            preferred_element_type=jnp.float32), 0.0)
    h = jnp.maximum(jnp.dot(h[:, :K2], slab_ref[ROW_W2:ROW_W2 + K2, :],
                            preferred_element_type=jnp.float32), 0.0)
    h = jnp.maximum(jnp.dot(h[:, :K3], slab_ref[ROW_W3:ROW_W3 + K3, :],
                            preferred_element_type=jnp.float32), 0.0)
    h = jnp.maximum(jnp.dot(h[:, :K4], slab_ref[ROW_W4:ROW_W4 + K4, :],
                            preferred_element_type=jnp.float32), 0.0)
    # Output layer: weight columns >= LABEL_LEN are zero, so lanes >= 4 of the
    # lane-dense (TILE_ROWS, 128) store are exactly zero (sliced off outside).
    out_ref[...] = jnp.dot(h[:, :K5], slab_ref[ROW_W5:ROW_W5 + K5, :],
                           preferred_element_type=jnp.float32)


def pack_params(params):
    """One-time packing: fold conv into dense1, fold biases, build the slab."""
    conv_w, conv_b, w1, b1, w2, b2, w3, b3, w4, b4, w5, b5 = params

    # Conv folding.  PyTorch flatten order of the conv output is f*LM1 + t, so
    #   h1[b,j] = sum_{f,t} w1[j,f*LM1+t]*(cw[f,0]x[b,t]+cw[f,1]x[b,t+1]+cb[f]) + b1[j]
    w1r = w1.reshape(H1, NUM_FILTERS, LM1)                  # (H1, F, LM1)
    a0 = jnp.einsum('f,jft->tj', conv_w[:, 0], w1r)         # coeff of x[:, t]
    a1 = jnp.einsum('f,jft->tj', conv_w[:, 1], w1r)         # coeff of x[:, t+1]
    w_eff = jnp.zeros((L, H1), jnp.float32)
    w_eff = w_eff.at[:LM1, :].add(a0)
    w_eff = w_eff.at[1:, :].add(a1)
    b_eff = b1 + jnp.einsum('f,jft->j', conv_b, w1r)

    slab = jnp.zeros((SLAB_ROWS, LANES), jnp.float32)

    def put_layer(s, row, w_in_major, bias, in_used, out_used, carry_out):
        # w_in_major: (in_used, out_used).  Bias occupies the carrier row
        # (block row == carrier lane of the LHS); padded rows/lanes stay zero.
        s = s.at[row:row + in_used, :out_used].set(w_in_major.astype(jnp.float32))
        s = s.at[row + in_used, :out_used].set(bias.astype(jnp.float32))
        if carry_out:
            s = s.at[row + in_used, out_used].set(1.0)  # propagate carrier lane
        return s

    slab = put_layer(slab, ROW_W1, w_eff, b_eff, L, H1, True)
    slab = put_layer(slab, ROW_W2, w2.T, b2, H1, H2, True)
    slab = put_layer(slab, ROW_W3, w3.T, b3, H2, H3, True)
    slab = put_layer(slab, ROW_W4, w4.T, b4, H3, H4, True)
    slab = put_layer(slab, ROW_W5, w5.T, b5, H4, LABEL_LEN, False)
    return slab


def ffn_forward(x, slab):
    batch = x.shape[0]
    x_flat = x.reshape(batch, L).astype(jnp.float32)   # == inputs.view(batch, 1, -1)

    rows = pl.cdiv(batch, TILE_ROWS) * TILE_ROWS       # pad batch to sublane granule
    x_pad = jnp.zeros((rows, LANES), jnp.float32)
    x_pad = x_pad.at[:batch, :L].set(x_flat)
    x_pad = x_pad.at[:, ONE_LANE].set(1.0)             # bias-fold carrier lane

    out_pad = pl.pallas_call(
        ffn_kernel,
        out_shape=jax.ShapeDtypeStruct((rows, LANES), jnp.float32),
        grid_spec=pltpu.PrefetchScalarGridSpec(
            num_scalar_prefetch=0,
            grid=(rows // TILE_ROWS,),
            in_specs=[
                # batch tile streamed per grid step
                pl.BlockSpec((TILE_ROWS, LANES), lambda i: (i, 0)),
                # weight slab: constant block index -> DMA'd once, VMEM-resident
                pl.BlockSpec((SLAB_ROWS, LANES), lambda i: (0, 0)),
            ],
            out_specs=pl.BlockSpec((TILE_ROWS, LANES), lambda i: (i, 0)),
        ),
        compiler_params=pltpu.CompilerParams(
            dimension_semantics=("parallel",)),
        cost_estimate=pl.CostEstimate(
            flops=2 * rows * (K1 + K2 + K3 + K4 + K5) * LANES,
            transcendentals=0,
            bytes_accessed=(2 * rows * LANES + SLAB_ROWS * LANES) * 4,
        ),
    )(x_pad, slab)

    return out_pad[:batch, :LABEL_LEN].reshape(batch, 1, LABEL_LEN)


ffn_forward_jit = jax.jit(ffn_forward)


# ---- deterministic parameter init (PyTorch-style uniform fan-in bounds) ------
def build_params(key):
    ks = jax.random.split(key, 12)

    def u(k, shape, fan_in):
        bound = 1.0 / float(fan_in) ** 0.5
        return jax.random.uniform(k, shape, jnp.float32, -bound, bound)

    in1 = NUM_FILTERS * LM1
    conv_w = u(ks[0], (NUM_FILTERS, KERNEL_SIZE), KERNEL_SIZE)   # (F, k), in_ch=1
    conv_b = u(ks[1], (NUM_FILTERS,), KERNEL_SIZE)
    w1 = u(ks[2], (H1, in1), in1);        b1 = u(ks[3], (H1,), in1)
    w2 = u(ks[4], (H2, H1), H1);          b2 = u(ks[5], (H2,), H1)
    w3 = u(ks[6], (H3, H2), H2);          b3 = u(ks[7], (H3,), H2)
    w4 = u(ks[8], (H4, H3), H3);          b4 = u(ks[9], (H4,), H3)
    w5 = u(ks[10], (LABEL_LEN, H4), H4);  b5 = u(ks[11], (LABEL_LEN,), H4)
    return conv_w, conv_b, w1, b1, w2, b2, w3, b3, w4, b4, w5, b5


# ---- pure-JAX reference (mirrors the PyTorch forward, unfused conv) ----------
def reference(x, params):
    (conv_w, conv_b, w1, b1, w2, b2, w3, b3, w4, b4, w5, b5) = params
    batch = x.shape[0]
    x_flat = x.reshape(batch, L)
    x0 = x_flat[:, :LM1]
    x1 = x_flat[:, 1:]
    conv = (conv_w[None, :, 0, None] * x0[:, None, :]
            + conv_w[None, :, 1, None] * x1[:, None, :]
            + conv_b[None, :, None])                      # (B, F, LM1)
    flat = conv.reshape(batch, NUM_FILTERS * LM1)
    h = jax.nn.relu(flat @ w1.T + b1)
    h = jax.nn.relu(h @ w2.T + b2)
    h = jax.nn.relu(h @ w3.T + b3)
    h = jax.nn.relu(h @ w4.T + b4)
    out = h @ w5.T + b5
    return out.reshape(batch, 1, LABEL_LEN)


if __name__ == "__main__":
    key = jax.random.PRNGKey(0)
    pkey, xkey = jax.random.split(key)
    params = build_params(pkey)
    slab = jax.block_until_ready(pack_params(params))    # packed once, reused

    x = jax.random.normal(xkey, (B, SEQ_LEN, ENC_IN), jnp.float32)

    out = ffn_forward_jit(x, slab)
    out = jax.block_until_ready(out)

    ref = reference(x, params)
    assert out.shape == (B, 1, LABEL_LEN)
    assert jnp.allclose(out, ref, atol=1e-4, rtol=1e-4), (out, ref)
    print("KERNEL_OK")
</pallas_src>

<mosaic_0001>
module attributes {stable_mosaic.version = 11 : i64} {
  func.func @ffn_kernel(%arg0: i32, %arg1: memref<8x128xf32, #tpu.memory_space<vmem>>, %arg2: memref<104x128xf32, #tpu.memory_space<vmem>>, %arg3: memref<8x128xf32, #tpu.memory_space<vmem>>) attributes {dimension_semantics = [#tpu.dimension_semantics<parallel>], iteration_bounds = array<i64: 1>, scalar_prefetch = 0 : i64, scratch_operands = 0 : i64, tpu.core_type = #tpu.core_type<tc>, window_params = [{transform_indices = @transform_0, window_bounds = array<i64: 8, 128>}, {pipeline_mode = #tpu.pipeline_mode<synchronous>, transform_indices = @transform_1, window_bounds = array<i64: 104, 128>}, {transform_indices = @transform_2, window_bounds = array<i64: 8, 128>}]} {
    %c0 = arith.constant 0 : index
    %c0_0 = arith.constant 0 : index
    %0 = vector.load %arg1[%c0, %c0_0] : memref<8x128xf32, #tpu.memory_space<vmem>>, vector<8x128xf32>
    %1 = vector.extract_strided_slice %0 {offsets = [0, 0], sizes = [8, 40], strides = [1, 1]} : vector<8x128xf32> to vector<8x40xf32>
    %c0_1 = arith.constant 0 : index
    %c0_2 = arith.constant 0 : index
    %2 = vector.load %arg2[%c0_1, %c0_2] : memref<104x128xf32, #tpu.memory_space<vmem>>, vector<40x128xf32>
    %cst = arith.constant dense<0.000000e+00> : vector<8x128xf32>
    %3 = tpu.matmul %1, %2, %cst {dimension_numbers = #tpu.dot_dimension_numbers<[1], [0], [0], [1], [0, 0, 1, 1], [], []>} : vector<8x40xf32>, vector<40x128xf32>, vector<8x128xf32> -> vector<8x128xf32>
    %cst_3 = arith.constant 0.000000e+00 : f32
    %4 = vector.broadcast %cst_3 : f32 to vector<8x128xf32>
    %5 = arith.maximumf %3, %4 : vector<8x128xf32>
    %6 = vector.extract_strided_slice %5 {offsets = [0, 0], sizes = [8, 24], strides = [1, 1]} : vector<8x128xf32> to vector<8x24xf32>
    %c40 = arith.constant 40 : index
    %c0_4 = arith.constant 0 : index
    %7 = vector.load %arg2[%c40, %c0_4] : memref<104x128xf32, #tpu.memory_space<vmem>>, vector<24x128xf32>
    %cst_5 = arith.constant dense<0.000000e+00> : vector<8x128xf32>
    %8 = tpu.matmul %6, %7, %cst_5 {dimension_numbers = #tpu.dot_dimension_numbers<[1], [0], [0], [1], [0, 0, 1, 1], [], []>} : vector<8x24xf32>, vector<24x128xf32>, vector<8x128xf32> -> vector<8x128xf32>
    %cst_6 = arith.constant 0.000000e+00 : f32
    %9 = vector.broadcast %cst_6 : f32 to vector<8x128xf32>
    %10 = arith.maximumf %8, %9 : vector<8x128xf32>
    %11 = vector.extract_strided_slice %10 {offsets = [0, 0], sizes = [8, 16], strides = [1, 1]} : vector<8x128xf32> to vector<8x16xf32>
    %c64 = arith.constant 64 : index
    %c0_7 = arith.constant 0 : index
    %12 = vector.load %arg2[%c64, %c0_7] : memref<104x128xf32, #tpu.memory_space<vmem>>, vector<16x128xf32>
    %cst_8 = arith.constant dense<0.000000e+00> : vector<8x128xf32>
    %13 = tpu.matmul %11, %12, %cst_8 {dimension_numbers = #tpu.dot_dimension_numbers<[1], [0], [0], [1], [0, 0, 1, 1], [], []>} : vector<8x16xf32>, vector<16x128xf32>, vector<8x128xf32> -> vector<8x128xf32>
    %cst_9 = arith.constant 0.000000e+00 : f32
    %14 = vector.broadcast %cst_9 : f32 to vector<8x128xf32>
    %15 = arith.maximumf %13, %14 : vector<8x128xf32>
    %16 = vector.extract_strided_slice %15 {offsets = [0, 0], sizes = [8, 16], strides = [1, 1]} : vector<8x128xf32> to vector<8x16xf32>
    %c80 = arith.constant 80 : index
    %c0_10 = arith.constant 0 : index
    %17 = vector.load %arg2[%c80, %c0_10] : memref<104x128xf32, #tpu.memory_space<vmem>>, vector<16x128xf32>
    %cst_11 = arith.constant dense<0.000000e+00> : vector<8x128xf32>
    %18 = tpu.matmul %16, %17, %cst_11 {dimension_numbers = #tpu.dot_dimension_numbers<[1], [0], [0], [1], [0, 0, 1, 1], [], []>} : vector<8x16xf32>, vector<16x128xf32>, vector<8x128xf32> -> vector<8x128xf32>
    %cst_12 = arith.constant 0.000000e+00 : f32
    %19 = vector.broadcast %cst_12 : f32 to vector<8x128xf32>
    %20 = arith.maximumf %18, %19 : vector<8x128xf32>
    %21 = vector.extract_strided_slice %20 {offsets = [0, 0], sizes = [8, 8], strides = [1, 1]} : vector<8x128xf32> to vector<8x8xf32>
    %c96 = arith.constant 96 : index
    %c0_13 = arith.constant 0 : index
    %22 = vector.load %arg2[%c96, %c0_13] : memref<104x128xf32, #tpu.memory_space<vmem>>, vector<8x128xf32>
    %cst_14 = arith.constant dense<0.000000e+00> : vector<8x128xf32>
    %23 = tpu.matmul %21, %22, %cst_14 {dimension_numbers = #tpu.dot_dimension_numbers<[1], [0], [0], [1], [0, 0, 1, 1], [], []>} : vector<8x8xf32>, vector<8x128xf32>, vector<8x128xf32> -> vector<8x128xf32>
    %c0_15 = arith.constant 0 : index
    %c0_16 = arith.constant 0 : index
    %24 = vector.load %arg3[%c0_15, %c0_16] : memref<8x128xf32, #tpu.memory_space<vmem>>, vector<8x128xf32>
    tpu.vector_store %arg3[%c0_15, %c0_16], %23 {strides = array<i32>} : memref<8x128xf32, #tpu.memory_space<vmem>>, vector<8x128xf32>,
    return
  }
  func.func @transform_0(%arg0: i32) -> (i32, i32) {
    %c0_i32 = arith.constant 0 : i32
    %c0_i32_0 = arith.constant 0 : i32
    return %arg0, %c0_i32 : i32, i32
  }
  func.func @transform_1(%arg0: i32) -> (i32, i32) {
    %c0_i32 = arith.constant 0 : i32
    %c0_i32_0 = arith.constant 0 : i32
    %c0_i32_1 = arith.constant 0 : i32
    return %c0_i32, %c0_i32_0 : i32, i32
  }
  func.func @transform_2(%arg0: i32) -> (i32, i32) {
    %c0_i32 = arith.constant 0 : i32
    %c0_i32_0 = arith.constant 0 : i32
    return %arg0, %c0_i32 : i32, i32
  }
}

</mosaic_0001>

<llo_original>
// kernel: ffn_forward.1
$region0: #{ffn_forward.1}
  #allocation0 [shape = 'u32[]', space=smem, size = 0x4, offset = 0x4, fixed_abs, tag = 'smem constant byte address 0x4 - core index']
  #allocation1 [shape = 'u32[144,128]{1,0:T(1,128)}', space=vmem, size = 0x12000, scoped, tag = 'internal scratch']
  %s0 = inlined_call_operand.vmem [shape: f32[8,128], index: 0, kind: input, shape index: {}]
  %s1 = inlined_call_operand.hbm [shape: f32[104,128], index: 1, kind: input, shape index: {}]
  %s2 = inlined_call_operand.vmem [shape: f32[8,128], index: 2, kind: output, shape index: {}]
  %s3 = sld [smem:[#allocation0]]
  $region22: #{ffn_forward.1} parent=0
    _
  %s5 = ssub.s32 1, %s3
  %s6 = scalar_select 0, %s5, %s3
  $region1: #{ffn_forward.1} parent=0
    #allocation2 [shape = 'u8[53248]{0}', space=vmem, size = 0xd000, scoped, tag = 'input window, operand 1, single buffered']
    #allocation3 [shape = 's32[1]{0}', space=sflag, size = 0x4, scoped, tag = 'scoped memory for ffn_forward.1']
    %7 = vsyncpa [#allocation3], 0
    // Predicated region
    $region2: #{ffn_forward.1} parent=1 // pred_check
      _
    $region3: #{ffn_forward.1} parent=1 // pred_check_branch
      %9 = sbr.rel (0) target = $region5
    $region4: #{ffn_forward.1} parent=1 // pred_region
      _
    $region5: #{ffn_forward.1} parent=1 // pred_fallthru
      _
    // Predicated region
    $region6: #{ffn_forward.1} parent=1 // pred_check
      _
    $region7: #{ffn_forward.1} parent=1 // pred_check_branch
      %11 = sbr.rel (0) target = $region9
    $region8: #{ffn_forward.1} parent=1 // pred_region
      %s13 = ssub.s32 1664, 1664
      %14 = vsyncadd [#allocation3], %s13
      %s15 = sshll.u32 [#allocation2], 4
      %s16 = int_to_ptr.vmem [resolvable:$true] %s15
      %21 = dma.hbm_to_vmem [thread:$0]  %s1, 1664, %s16, [#allocation3], 128, 128, 8
    $region9: #{ffn_forward.1} parent=1 // pred_fallthru
      _
    // Predicated region
    $region10: #{ffn_forward.1} parent=1 // pred_check
      _
    $region11: #{ffn_forward.1} parent=1 // pred_check_branch
      %23 = sbr.rel (0) target = $region13
    $region12: #{ffn_forward.1} parent=1 // pred_region
      %24 = dma.done [#allocation3], 1664
    $region13: #{ffn_forward.1} parent=1 // pred_fallthru
      _
    %v25 = vld [vmem:[%s0] sm:$0xff]
    %v26 = vld [vmem:[#allocation2] sm:$0xff]
    %v27 = vld [vmem:[#allocation2 + $0x8] sm:$0xff]
    %v28 = vld [vmem:[#allocation2 + $0x10] sm:$0xff]
    %v29 = vld [vmem:[#allocation2 + $0x18] sm:$0xff]
    %v30 = vld [vmem:[#allocation2 + $0x20] sm:$0xff]
    %vm31 = vcmask 326656
    %v33 = vsel %vm31, %v25, 0
    %35 = vmatprep.subr.mxu0 0.0
    %36 = vmatpush1.msra.mxu0 %v26
    %37 = vmatprep.subr.mxu0 0.0
    %38 = vmatpush1.msra.mxu0 %v27
    %39 = vmatprep.subr.mxu0 0.0
    %40 = vmatpush1.msra.mxu0 %v28
    %41 = vmatprep.subr.mxu0 0.0
    %42 = vmatpush1.msra.mxu0 %v29
    %43 = vmatprep.subr.mxu0 0.0
    %44 = vmatpush1.msra.mxu0 %v30
    %45 = vmatprep.subr.mxu0 0.0
    %46 = vmatpush1.msra.mxu0 0.0
    %47 = vmatprep.subr.mxu0 0.0
    %48 = vmatpush1.msra.mxu0 0.0
    %49 = vmatprep.subr.mxu0 0.0
    %50 = vmatpush1.msra.mxu0 0.0
    %51 = vmatprep.subr.mxu0 0.0
    %52 = vmatpush1.msra.mxu0 0.0
    %53 = vmatprep.subr.mxu0 0.0
    %54 = vmatpush1.msra.mxu0 0.0
    %55 = vmatprep.subr.mxu0 0.0
    %56 = vmatpush1.msra.mxu0 0.0
    %57 = vmatprep.subr.mxu0 0.0
    %58 = vmatpush1.msra.mxu0 0.0
    %59 = vmatprep.subr.mxu0 0.0
    %60 = vmatpush1.msra.mxu0 0.0
    %61 = vmatprep.subr.mxu0 0.0
    %62 = vmatpush1.msra.mxu0 0.0
    %63 = vmatprep.subr.mxu0 0.0
    %64 = vmatpush1.msra.mxu0 0.0
    %65 = vmatprep.subr.mxu0 0.0
    %66 = vmatpush1.msra.mxu0 0.0
    %67 = vmatprep.subr.mxu0 0.0
    %68 = vmatpush1.msra.mxu0 0.0
    %69 = vmatprep.subr.mxu0 0.0
    %70 = vmatpush1.msra.mxu0 0.0
    %71 = vmatprep.subr.mxu0 0.0
    %72 = vmatpush1.msra.mxu0 0.0
    %73 = vmatprep.subr.mxu0 0.0
    %74 = vmatpush1.msra.mxu0 0.0
    %75 = vmatprep.subr.mxu0 0.0
    %76 = vmatpush1.msra.mxu0 0.0
    %77 = vmatprep.subr.mxu0 0.0
    %78 = vmatpush1.msra.mxu0 0.0
    %79 = vmatprep.subr.mxu0 0.0
    %80 = vmatpush1.msra.mxu0 0.0
    %81 = vmatprep.subr.mxu0 0.0
    %82 = vmatpush1.msra.mxu0 0.0
    %83 = vmatprep.subr.mxu0 0.0
    %84 = vmatpush1.msra.mxu0 0.0
    %85 = vmatprep.subr.mxu0 0.0
    %86 = vmatpush1.msra.mxu0 0.0
    %87 = vmatprep.subr.mxu0 0.0
    %88 = vmatpush1.msra.mxu0 0.0
    %89 = vmatprep.subr.mxu0 0.0
    %90 = vmatpush1.msra.mxu0 0.0
    %91 = vmatprep.subr.mxu0 0.0
    %92 = vmatpush1.msra.mxu0 0.0
    %93 = vmatprep.subr.mxu0 0.0
    %94 = vmatpush1.msra.mxu0 0.0
    %95 = vmatprep.subr.mxu0 0.0
    %96 = vmatpush1.msra.mxu0 0.0
    %97 = vmatprep.subr.mxu0 0.0
    %98 = vmatpush1.msra.mxu0 0.0
    %99 = vmatprep.mubr.f32.mxu0 0.0
    %100 = vmatmul.mubr.f32.gmra.mrb[0].mxu0 %v33
    %v101 = vpop.f32.mrb[0].mxu0
    %v102 = vadd.f32 0.0, %v101
    %v103 = vpop.f32.mrb[0].mxu0
    %104 = vdwg.mxu0
    %v105 = vmax.f32 %v102, 0.0
    %v106 = vld [vmem:[#allocation2 + $0x28] sm:$0xff]
    %v107 = vld [vmem:[#allocation2 + $0x30] sm:$0xff]
    %v108 = vld [vmem:[#allocation2 + $0x38] sm:$0xff]
    %vm109 = vcmask 195584
    %v111 = vsel %vm109, %v105, 0
    %113 = vmatprep.subr.mxu0 0.0
    %114 = vmatpush1.msra.mxu0 %v106
    %115 = vmatprep.subr.mxu0 0.0
    %116 = vmatpush1.msra.mxu0 %v107
    %117 = vmatprep.subr.mxu0 0.0
    %118 = vmatpush1.msra.mxu0 %v108
    %119 = vmatprep.subr.mxu0 0.0
    %120 = vmatpush1.msra.mxu0 0.0
    %121 = vmatprep.subr.mxu0 0.0
    %122 = vmatpush1.msra.mxu0 0.0
    %123 = vmatprep.subr.mxu0 0.0
    %124 = vmatpush1.msra.mxu0 0.0
    %125 = vmatprep.subr.mxu0 0.0
    %126 = vmatpush1.msra.mxu0 0.0
    %127 = vmatprep.subr.mxu0 0.0
    %128 = vmatpush1.msra.mxu0 0.0
    %129 = vmatprep.subr.mxu0 0.0
    %130 = vmatpush1.msra.mxu0 0.0
    %131 = vmatprep.subr.mxu0 0.0
    %132 = vmatpush1.msra.mxu0 0.0
    %133 = vmatprep.subr.mxu0 0.0
    %134 = vmatpush1.msra.mxu0 0.0
    %135 = vmatprep.subr.mxu0 0.0
    %136 = vmatpush1.msra.mxu0 0.0
    %137 = vmatprep.subr.mxu0 0.0
    %138 = vmatpush1.msra.mxu0 0.0
    %139 = vmatprep.subr.mxu0 0.0
    %140 = vmatpush1.msra.mxu0 0.0
    %141 = vmatprep.subr.mxu0 0.0
    %142 = vmatpush1.msra.mxu0 0.0
    %143 = vmatprep.subr.mxu0 0.0
    %144 = vmatpush1.msra.mxu0 0.0
    %145 = vmatprep.subr.mxu0 0.0
    %146 = vmatpush1.msra.mxu0 0.0
    %147 = vmatprep.subr.mxu0 0.0
    %148 = vmatpush1.msra.mxu0 0.0
    %149 = vmatprep.subr.mxu0 0.0
    %150 = vmatpush1.msra.mxu0 0.0
    %151 = vmatprep.subr.mxu0 0.0
    %152 = vmatpush1.msra.mxu0 0.0
    %153 = vmatprep.subr.mxu0 0.0
    %154 = vmatpush1.msra.mxu0 0.0
    %155 = vmatprep.subr.mxu0 0.0
    %156 = vmatpush1.msra.mxu0 0.0
    %157 = vmatprep.subr.mxu0 0.0
    %158 = vmatpush1.msra.mxu0 0.0
    %159 = vmatprep.subr.mxu0 0.0
    %160 = vmatpush1.msra.mxu0 0.0
    %161 = vmatprep.subr.mxu0 0.0
    %162 = vmatpush1.msra.mxu0 0.0
    %163 = vmatprep.subr.mxu0 0.0
    %164 = vmatpush1.msra.mxu0 0.0
    %165 = vmatprep.subr.mxu0 0.0
    %166 = vmatpush1.msra.mxu0 0.0
    %167 = vmatprep.subr.mxu0 0.0
    %168 = vmatpush1.msra.mxu0 0.0
    %169 = vmatprep.subr.mxu0 0.0
    %170 = vmatpush1.msra.mxu0 0.0
    %171 = vmatprep.subr.mxu0 0.0
    %172 = vmatpush1.msra.mxu0 0.0
    %173 = vmatprep.subr.mxu0 0.0
    %174 = vmatpush1.msra.mxu0 0.0
    %175 = vmatprep.subr.mxu0 0.0
    %176 = vmatpush1.msra.mxu0 0.0
    %177 = vmatprep.mubr.f32.mxu0 0.0
    %178 = vmatmul.mubr.f32.gmra.mrb[0].mxu0 %v111
    %v179 = vpop.f32.mrb[0].mxu0
    %v180 = vadd.f32 0.0, %v179
    %v181 = vpop.f32.mrb[0].mxu0
    %182 = vdwg.mxu0
    %v183 = vmax.f32 %v180, 0.0
    %v184 = vld [vmem:[#allocation2 + $0x40] sm:$0xff]
    %v185 = vld [vmem:[#allocation2 + $0x48] sm:$0xff]
    %vm186 = vcmask 130048
    %v188 = vsel %vm186, %v183, 0
    %190 = vmatprep.subr.mxu0 0.0
    %191 = vmatpush1.msra.mxu0 %v184
    %192 = vmatprep.subr.mxu0 0.0
    %193 = vmatpush1.msra.mxu0 %v185
    %194 = vmatprep.subr.mxu0 0.0
    %195 = vmatpush1.msra.mxu0 0.0
    %196 = vmatprep.subr.mxu0 0.0
    %197 = vmatpush1.msra.mxu0 0.0
    %198 = vmatprep.subr.mxu0 0.0
    %199 = vmatpush1.msra.mxu0 0.0
    %200 = vmatprep.subr.mxu0 0.0
    %201 = vmatpush1.msra.mxu0 0.0
    %202 = vmatprep.subr.mxu0 0.0
    %203 = vmatpush1.msra.mxu0 0.0
    %204 = vmatprep.subr.mxu0 0.0
    %205 = vmatpush1.msra.mxu0 0.0
    %206 = vmatprep.subr.mxu0 0.0
    %207 = vmatpush1.msra.mxu0 0.0
    %208 = vmatprep.subr.mxu0 0.0
    %209 = vmatpush1.msra.mxu0 0.0
    %210 = vmatprep.subr.mxu0 0.0
    %211 = vmatpush1.msra.mxu0 0.0
    %212 = vmatprep.subr.mxu0 0.0
    %213 = vmatpush1.msra.mxu0 0.0
    %214 = vmatprep.subr.mxu0 0.0
    %215 = vmatpush1.msra.mxu0 0.0
    %216 = vmatprep.subr.mxu0 0.0
    %217 = vmatpush1.msra.mxu0 0.0
    %218 = vmatprep.subr.mxu0 0.0
    %219 = vmatpush1.msra.mxu0 0.0
    %220 = vmatprep.subr.mxu0 0.0
    %221 = vmatpush1.msra.mxu0 0.0
    %222 = vmatprep.subr.mxu0 0.0
    %223 = vmatpush1.msra.mxu0 0.0
    %224 = vmatprep.subr.mxu0 0.0
    %225 = vmatpush1.msra.mxu0 0.0
    %226 = vmatprep.subr.mxu0 0.0
    %227 = vmatpush1.msra.mxu0 0.0
    %228 = vmatprep.subr.mxu0 0.0
    %229 = vmatpush1.msra.mxu0 0.0
    %230 = vmatprep.subr.mxu0 0.0
    %231 = vmatpush1.msra.mxu0 0.0
    %232 = vmatprep.subr.mxu0 0.0
    %233 = vmatpush1.msra.mxu0 0.0
    %234 = vmatprep.subr.mxu0 0.0
    %235 = vmatpush1.msra.mxu0 0.0
    %236 = vmatprep.subr.mxu0 0.0
    %237 = vmatpush1.msra.mxu0 0.0
    %238 = vmatprep.subr.mxu0 0.0
    %239 = vmatpush1.msra.mxu0 0.0
    %240 = vmatprep.subr.mxu0 0.0
    %241 = vmatpush1.msra.mxu0 0.0
    %242 = vmatprep.subr.mxu0 0.0
    %243 = vmatpush1.msra.mxu0 0.0
    %244 = vmatprep.subr.mxu0 0.0
    %245 = vmatpush1.msra.mxu0 0.0
    %246 = vmatprep.subr.mxu0 0.0
    %247 = vmatpush1.msra.mxu0 0.0
    %248 = vmatprep.subr.mxu0 0.0
    %249 = vmatpush1.msra.mxu0 0.0
    %250 = vmatprep.subr.mxu0 0.0
    %251 = vmatpush1.msra.mxu0 0.0
    %252 = vmatprep.subr.mxu0 0.0
    %253 = vmatpush1.msra.mxu0 0.0
    %254 = vmatprep.mubr.f32.mxu0 0.0
    %255 = vmatmul.mubr.f32.gmra.mrb[0].mxu0 %v188
    %v256 = vpop.f32.mrb[0].mxu0
    %v257 = vadd.f32 0.0, %v256
    %v258 = vpop.f32.mrb[0].mxu0
    %259 = vdwg.mxu0
    %v260 = vmax.f32 %v257, 0.0
    %v261 = vld [vmem:[#allocation2 + $0x50] sm:$0xff]
    %v262 = vld [vmem:[#allocation2 + $0x58] sm:$0xff]
    %v264 = vsel %vm186, %v260, 0
    %266 = vmatprep.subr.mxu0 0.0
    %267 = vmatpush1.msra.mxu0 %v261
    %268 = vmatprep.subr.mxu0 0.0
    %269 = vmatpush1.msra.mxu0 %v262
    %270 = vmatprep.subr.mxu0 0.0
    %271 = vmatpush1.msra.mxu0 0.0
    %272 = vmatprep.subr.mxu0 0.0
    %273 = vmatpush1.msra.mxu0 0.0
    %274 = vmatprep.subr.mxu0 0.0
    %275 = vmatpush1.msra.mxu0 0.0
    %276 = vmatprep.subr.mxu0 0.0
    %277 = vmatpush1.msra.mxu0 0.0
    %278 = vmatprep.subr.mxu0 0.0
    %279 = vmatpush1.msra.mxu0 0.0
    %280 = vmatprep.subr.mxu0 0.0
    %281 = vmatpush1.msra.mxu0 0.0
    %282 = vmatprep.subr.mxu0 0.0
    %283 = vmatpush1.msra.mxu0 0.0
    %284 = vmatprep.subr.mxu0 0.0
    %285 = vmatpush1.msra.mxu0 0.0
    %286 = vmatprep.subr.mxu0 0.0
    %287 = vmatpush1.msra.mxu0 0.0
    %288 = vmatprep.subr.mxu0 0.0
    %289 = vmatpush1.msra.mxu0 0.0
    %290 = vmatprep.subr.mxu0 0.0
    %291 = vmatpush1.msra.mxu0 0.0
    %292 = vmatprep.subr.mxu0 0.0
    %293 = vmatpush1.msra.mxu0 0.0
    %294 = vmatprep.subr.mxu0 0.0
    %295 = vmatpush1.msra.mxu0 0.0
    %296 = vmatprep.subr.mxu0 0.0
    %297 = vmatpush1.msra.mxu0 0.0
    %298 = vmatprep.subr.mxu0 0.0
    %299 = vmatpush1.msra.mxu0 0.0
    %300 = vmatprep.subr.mxu0 0.0
    %301 = vmatpush1.msra.mxu0 0.0
    %302 = vmatprep.subr.mxu0 0.0
    %303 = vmatpush1.msra.mxu0 0.0
    %304 = vmatprep.subr.mxu0 0.0
    %305 = vmatpush1.msra.mxu0 0.0
    %306 = vmatprep.subr.mxu0 0.0
    %307 = vmatpush1.msra.mxu0 0.0
    %308 = vmatprep.subr.mxu0 0.0
    %309 = vmatpush1.msra.mxu0 0.0
    %310 = vmatprep.subr.mxu0 0.0
    %311 = vmatpush1.msra.mxu0 0.0
    %312 = vmatprep.subr.mxu0 0.0
    %313 = vmatpush1.msra.mxu0 0.0
    %314 = vmatprep.subr.mxu0 0.0
    %315 = vmatpush1.msra.mxu0 0.0
    %316 = vmatprep.subr.mxu0 0.0
    %317 = vmatpush1.msra.mxu0 0.0
    %318 = vmatprep.subr.mxu0 0.0
    %319 = vmatpush1.msra.mxu0 0.0
    %320 = vmatprep.subr.mxu0 0.0
    %321 = vmatpush1.msra.mxu0 0.0
    %322 = vmatprep.subr.mxu0 0.0
    %323 = vmatpush1.msra.mxu0 0.0
    %324 = vmatprep.subr.mxu0 0.0
    %325 = vmatpush1.msra.mxu0 0.0
    %326 = vmatprep.subr.mxu0 0.0
    %327 = vmatpush1.msra.mxu0 0.0
    %328 = vmatprep.subr.mxu0 0.0
    %329 = vmatpush1.msra.mxu0 0.0
    %330 = vmatprep.mubr.f32.mxu0 0.0
    %331 = vmatmul.mubr.f32.gmra.mrb[0].mxu0 %v264
    %v332 = vpop.f32.mrb[0].mxu0
    %v333 = vadd.f32 0.0, %v332
    %v334 = vpop.f32.mrb[0].mxu0
    %335 = vdwg.mxu0
    %v336 = vmax.f32 %v333, 0.0
    %v337 = vld [vmem:[#allocation2 + $0x60] sm:$0xff]
    %vm338 = vcmask 64512
    %v340 = vsel %vm338, %v336, 0
    %342 = vmatprep.subr.mxu0 0.0
    %343 = vmatpush1.msra.mxu0 %v337
    %344 = vmatprep.subr.mxu0 0.0
    %345 = vmatpush1.msra.mxu0 0.0
    %346 = vmatprep.subr.mxu0 0.0
    %347 = vmatpush1.msra.mxu0 0.0
    %348 = vmatprep.subr.mxu0 0.0
    %349 = vmatpush1.msra.mxu0 0.0
    %350 = vmatprep.subr.mxu0 0.0
    %351 = vmatpush1.msra.mxu0 0.0
    %352 = vmatprep.subr.mxu0 0.0
    %353 = vmatpush1.msra.mxu0 0.0
    %354 = vmatprep.subr.mxu0 0.0
    %355 = vmatpush1.msra.mxu0 0.0
    %356 = vmatprep.subr.mxu0 0.0
    %357 = vmatpush1.msra.mxu0 0.0
    %358 = vmatprep.subr.mxu0 0.0
    %359 = vmatpush1.msra.mxu0 0.0
    %360 = vmatprep.subr.mxu0 0.0
    %361 = vmatpush1.msra.mxu0 0.0
    %362 = vmatprep.subr.mxu0 0.0
    %363 = vmatpush1.msra.mxu0 0.0
    %364 = vmatprep.subr.mxu0 0.0
    %365 = vmatpush1.msra.mxu0 0.0
    %366 = vmatprep.subr.mxu0 0.0
    %367 = vmatpush1.msra.mxu0 0.0
    %368 = vmatprep.subr.mxu0 0.0
    %369 = vmatpush1.msra.mxu0 0.0
    %370 = vmatprep.subr.mxu0 0.0
    %371 = vmatpush1.msra.mxu0 0.0
    %372 = vmatprep.subr.mxu0 0.0
    %373 = vmatpush1.msra.mxu0 0.0
    %374 = vmatprep.subr.mxu0 0.0
    %375 = vmatpush1.msra.mxu0 0.0
    %376 = vmatprep.subr.mxu0 0.0
    %377 = vmatpush1.msra.mxu0 0.0
    %378 = vmatprep.subr.mxu0 0.0
    %379 = vmatpush1.msra.mxu0 0.0
    %380 = vmatprep.subr.mxu0 0.0
    %381 = vmatpush1.msra.mxu0 0.0
    %382 = vmatprep.subr.mxu0 0.0
    %383 = vmatpush1.msra.mxu0 0.0
    %384 = vmatprep.subr.mxu0 0.0
    %385 = vmatpush1.msra.mxu0 0.0
    %386 = vmatprep.subr.mxu0 0.0
    %387 = vmatpush1.msra.mxu0 0.0
    %388 = vmatprep.subr.mxu0 0.0
    %389 = vmatpush1.msra.mxu0 0.0
    %390 = vmatprep.subr.mxu0 0.0
    %391 = vmatpush1.msra.mxu0 0.0
    %392 = vmatprep.subr.mxu0 0.0
    %393 = vmatpush1.msra.mxu0 0.0
    %394 = vmatprep.subr.mxu0 0.0
    %395 = vmatpush1.msra.mxu0 0.0
    %396 = vmatprep.subr.mxu0 0.0
    %397 = vmatpush1.msra.mxu0 0.0
    %398 = vmatprep.subr.mxu0 0.0
    %399 = vmatpush1.msra.mxu0 0.0
    %400 = vmatprep.subr.mxu0 0.0
    %401 = vmatpush1.msra.mxu0 0.0
    %402 = vmatprep.subr.mxu0 0.0
    %403 = vmatpush1.msra.mxu0 0.0
    %404 = vmatprep.subr.mxu0 0.0
    %405 = vmatpush1.msra.mxu0 0.0
    %406 = vmatprep.mubr.f32.mxu0 0.0
    %407 = vmatmul.mubr.f32.gmra.mrb[0].mxu0 %v340
    %v408 = vpop.f32.mrb[0].mxu0
    %v409 = vadd.f32 0.0, %v408
    %v410 = vpop.f32.mrb[0].mxu0
    %411 = vdwg.mxu0
    %412 = vst [vmem:[%s2] sm:$0xff] %v409
    // Predicated region
    $region14: #{ffn_forward.1} parent=1 // pred_check
      _
    $region15: #{ffn_forward.1} parent=1 // pred_check_branch
      %414 = sbr.rel (0) target = $region17
    $region16: #{ffn_forward.1} parent=1 // pred_region
      _
    $region17: #{ffn_forward.1} parent=1 // pred_fallthru
      _
    // Predicated region
    $region18: #{ffn_forward.1} parent=1 // pred_check
      _
    $region19: #{ffn_forward.1} parent=1 // pred_check_branch
      %416 = sbr.rel (0) target = $region21
    $region20: #{ffn_forward.1} parent=1 // pred_region
      _
    $region21: #{ffn_forward.1} parent=1 // pred_fallthru
      _
    %417 = vsyncpa [#allocation3], 1

</llo_original>
